<compile_context>
chip_gen: v6e
topology: v6e:2x2x1
jax: 0.10.0
libtpu: 0.0.40
codegen_flags: <defaults>
</compile_context>

<pallas_src>
import math

import jax
import jax.numpy as jnp
from jax.experimental import pallas as pl
from jax.experimental.pallas import tpu as pltpu


def _gated_attention_v_kernel(x_ref, w_ref, b_ref, o_ref):
    # x: (TM, K) bf16 row tile; w: (C, K) bf16 (torch layout, VMEM-resident);
    # b: (1, C) f32. Contract K against K directly -> (TM, C), f32 accumulation.
    acc = jax.lax.dot_general(
        x_ref[...], w_ref[...],
        dimension_numbers=(((1,), (1,)), ((), ())),
        preferred_element_type=jnp.float32,
    )
    o_ref[...] = jnp.tanh(acc + b_ref[...])


def _pick_block_rows(m, *, max_block=512, min_block=128, min_steps=4):
    """Largest 128-multiple tile <= max_block that still yields >= min_steps
    grid steps when M allows it (keeps both v7x TCs fed with >=2 steps each)."""
    if m <= min_block * min_steps:
        return min_block
    br = (m // min_steps) // 128 * 128
    return max(min_block, min(max_block, br))


def gated_attention_layer_v(features, w_v, b_v, *, max_block_rows: int = 512):
    """tanh(features @ W_V.T + b_V), matching GatedAttentionLayerV.forward.

    features: (..., dim) float32
    w_v:      (out_features, dim)   -- torch nn.Linear weight layout
    b_v:      (out_features,)
    returns:  (..., out_features) float32
    """
    *lead, k = features.shape
    c = w_v.shape[0]

    # Flatten leading dims; stream features (and weight) as bf16 to halve HBM bytes.
    x = features.reshape(-1, k).astype(jnp.bfloat16)
    m = x.shape[0]

    w = jnp.asarray(w_v, jnp.bfloat16)              # native (C, K) layout, no transpose
    b = jnp.asarray(b_v, jnp.float32).reshape(1, c)

    block_rows = _pick_block_rows(m, max_block=max_block_rows)
    grid = (pl.cdiv(m, block_rows),)                # partial last block handled by Pallas

    cost = pl.CostEstimate(
        flops=2 * m * k * c,
        bytes_accessed=m * k * 2 + k * c * 2 + c * 4 + m * c * 4,
        transcendentals=m * c,
    )

    out = pl.pallas_call(
        _gated_attention_v_kernel,
        grid=grid,
        in_specs=[
            pl.BlockSpec((block_rows, k), lambda i: (i, 0)),   # streamed row tiles (bf16)
            pl.BlockSpec((c, k), lambda i: (0, 0)),            # weight: VMEM-resident
            pl.BlockSpec((1, c), lambda i: (0, 0)),            # bias:   VMEM-resident
        ],
        out_specs=pl.BlockSpec((block_rows, c), lambda i: (i, 0)),
        out_shape=jax.ShapeDtypeStruct((m, c), jnp.float32),
        compiler_params=pltpu.CompilerParams(
            dimension_semantics=("parallel",)),
        cost_estimate=cost,
    )(x, w, b)

    return out.reshape(*lead, c)


def reference_forward(features, w_v, b_v):
    """Pure-JAX f32 reference mirroring torch: tanh(F.linear(features, W_V, b_V))."""
    pre = jnp.einsum("...k,ck->...c", features, w_v,
                     precision=jax.lax.Precision.HIGHEST) + b_v
    return jnp.tanh(pre)


if __name__ == "__main__":
    DIM = 512            # module default (dim=512)
    C = 4                # out_features of the W_V passed to forward
    BAGS, INST = 25, 10  # leading dims; flattened M = 250 -> block_rows=128, grid=2

    key = jax.random.PRNGKey(0)
    k_x, k_w, k_b = jax.random.split(key, 3)

    features = jax.random.normal(k_x, (BAGS, INST, DIM), dtype=jnp.float32)
    bound = 1.0 / math.sqrt(DIM)   # torch default Linear init range
    w_v = jax.random.uniform(k_w, (C, DIM), jnp.float32, -bound, bound)
    b_v = jax.random.uniform(k_b, (C,), jnp.float32, -bound, bound)

    out = gated_attention_layer_v(features, w_v, b_v)
    jax.block_until_ready(out)
    assert out.shape == (BAGS, INST, C)

    # f32 reference; tolerance deliberately loosened to 1e-2 because features /
    # weight are streamed in bf16 (f32 accumulation) per the perf review.
    ref = reference_forward(features, w_v, b_v)
    err = float(jnp.max(jnp.abs(out - ref)))
    assert jnp.allclose(out, ref, rtol=1e-2, atol=1e-2), err

    # Tight check against a bf16-input-consistent reference (same rounding of
    # the inputs, f32 math) to confirm the kernel itself is exact.
    ref_bf16 = jnp.tanh(
        jnp.einsum("...k,ck->...c",
                   features.astype(jnp.bfloat16).astype(jnp.float32),
                   w_v.astype(jnp.bfloat16).astype(jnp.float32),
                   precision=jax.lax.Precision.HIGHEST) + b_v)
    assert jnp.allclose(out, ref_bf16, rtol=1e-3, atol=1e-3), \
        float(jnp.max(jnp.abs(out - ref_bf16)))

    print("KERNEL_OK")
</pallas_src>

<mosaic_0001>
module attributes {stable_mosaic.version = 11 : i64} {
  func.func @_gated_attention_v_kernel(%arg0: i32, %arg1: memref<128x512xbf16, #tpu.memory_space<vmem>>, %arg2: memref<4x512xbf16, #tpu.memory_space<vmem>>, %arg3: memref<1x4xf32, #tpu.memory_space<vmem>>, %arg4: memref<128x4xf32, #tpu.memory_space<vmem>>) attributes {dimension_semantics = [#tpu.dimension_semantics<parallel>], iteration_bounds = array<i64: 2>, scalar_prefetch = 0 : i64, scratch_operands = 0 : i64, tpu.core_type = #tpu.core_type<tc>, window_params = [{transform_indices = @transform_0, window_bounds = array<i64: 128, 512>}, {pipeline_mode = #tpu.pipeline_mode<synchronous>, transform_indices = @transform_1, window_bounds = array<i64: 4, 512>}, {pipeline_mode = #tpu.pipeline_mode<synchronous>, transform_indices = @transform_2, window_bounds = array<i64: 1, 4>}, {transform_indices = @transform_3, window_bounds = array<i64: 128, 4>}]} {
    %c0 = arith.constant 0 : index
    %c0_0 = arith.constant 0 : index
    %0 = vector.load %arg1[%c0, %c0_0] : memref<128x512xbf16, #tpu.memory_space<vmem>>, vector<128x512xbf16>
    %c0_1 = arith.constant 0 : index
    %c0_2 = arith.constant 0 : index
    %1 = vector.load %arg2[%c0_1, %c0_2] : memref<4x512xbf16, #tpu.memory_space<vmem>>, vector<4x512xbf16>
    %cst = arith.constant dense<0.000000e+00> : vector<128x4xf32>
    %2 = tpu.matmul %0, %1, %cst {dimension_numbers = #tpu.dot_dimension_numbers<[1], [1], [0], [0], [0, 0, 1, 0], [], []>} : vector<128x512xbf16>, vector<4x512xbf16>, vector<128x4xf32> -> vector<128x4xf32>
    %c0_3 = arith.constant 0 : index
    %c0_4 = arith.constant 0 : index
    %3 = vector.load %arg3[%c0_3, %c0_4] : memref<1x4xf32, #tpu.memory_space<vmem>>, vector<1x4xf32>
    %4 = vector.broadcast %3 : vector<1x4xf32> to vector<128x4xf32>
    %5 = arith.addf %2, %4 : vector<128x4xf32>
    %6 = math.tanh %5 : vector<128x4xf32>
    %c0_5 = arith.constant 0 : index
    %c0_6 = arith.constant 0 : index
    %7 = vector.load %arg4[%c0_5, %c0_6] : memref<128x4xf32, #tpu.memory_space<vmem>>, vector<128x4xf32>
    tpu.vector_store %arg4[%c0_5, %c0_6], %6 {strides = array<i32>} : memref<128x4xf32, #tpu.memory_space<vmem>>, vector<128x4xf32>,
    return
  }
  func.func @transform_0(%arg0: i32) -> (i32, i32) {
    %c0_i32 = arith.constant 0 : i32
    %c0_i32_0 = arith.constant 0 : i32
    return %arg0, %c0_i32 : i32, i32
  }
  func.func @transform_1(%arg0: i32) -> (i32, i32) {
    %c0_i32 = arith.constant 0 : i32
    %c0_i32_0 = arith.constant 0 : i32
    %c0_i32_1 = arith.constant 0 : i32
    return %c0_i32, %c0_i32_0 : i32, i32
  }
  func.func @transform_2(%arg0: i32) -> (i32, i32) {
    %c0_i32 = arith.constant 0 : i32
    %c0_i32_0 = arith.constant 0 : i32
    %c0_i32_1 = arith.constant 0 : i32
    return %c0_i32, %c0_i32_0 : i32, i32
  }
  func.func @transform_3(%arg0: i32) -> (i32, i32) {
    %c0_i32 = arith.constant 0 : i32
    %c0_i32_0 = arith.constant 0 : i32
    return %arg0, %c0_i32 : i32, i32
  }
}

</mosaic_0001>

<llo_original>
// kernel: tpu_custom_call.1
$region0: #{tpu_custom_call.1}
  #allocation0 [shape = 'u32[]', space=smem, size = 0x4, offset = 0x4, fixed_abs, tag = 'smem constant byte address 0x4 - core index']
  #allocation1 [shape = 'u32[144,128]{1,0:T(1,128)}', space=vmem, size = 0x12000, scoped, tag = 'internal scratch']
  %s0 = inlined_call_operand.hbm [shape: bf16[250,512], index: 0, kind: input, shape index: {}]
  %s1 = inlined_call_operand.hbm [shape: bf16[4,512], index: 1, kind: input, shape index: {}]
  %s2 = inlined_call_operand.vmem [shape: f32[1,4], index: 2, kind: input, shape index: {}]
  %s3 = inlined_call_operand.vmem [shape: f32[250,4], index: 3, kind: output, shape index: {}]
  %s4 = sld [smem:[#allocation0]]
  $region53: #{tpu_custom_call.1} parent=0
    _
  %s6 = ssub.s32 1, %s4
  %s7 = scalar_select 0, %s6, %s4
  $region1: #{tpu_custom_call.1} parent=0
    #allocation2 [shape = 'u8[262144]{0}', space=vmem, size = 0x40000, scoped, tag = 'input window, operand 0']
    #allocation3 [shape = 's32[2]{0}', space=sflag, size = 0x8, scoped, tag = 'scoped memory for tpu_custom_call.1']
    #allocation4 [shape = 'u8[4096]{0}', space=vmem, size = 0x1000, scoped, tag = 'input window, operand 1, single buffered']
    #allocation5 [shape = 's32[1]{0}', space=sflag, size = 0x4, scoped, tag = 'scoped memory for tpu_custom_call.1']
    %8 = vsyncpa [#allocation3], 0
    %s9 = scalar_lea.sflag [#allocation3], 1
    %10 = vsyncpa %s9, 0
    %11 = vsyncpa [#allocation5], 0
    loop: start=0, step=1, limit=4
    $region2: #{tpu_custom_call.1} parent=1 // loop_pre_header
      _
    $region3: #{tpu_custom_call.1} parent=1 // loop_header
      %s13 = sphi 0, %s17
      %p14 = scmp.ge.s32.totalorder %s13, 4
      %s23 = sphi 0, %s25
      %s26 = sphi 0, %s23
      %s27 = sphi 0, %s26
      %s43 = sphi 0, %s27
      %s47 = sphi 0, %s47
      %s49 = sphi 0, %s47
      %s50 = sphi 0, %s49
      %s64 = sphi 0, %s50
      %s68 = sphi 0, %s68
      %s70 = sphi 0, %s68
      %s71 = sphi 0, %s70
      %s85 = sphi 0, %s71
      %s91 = sphi 0, %s93
      %s94 = sphi 0, %s91
      %s95 = sphi 0, %s94
      %s111 = sphi 0, %s95
    $region4: #{tpu_custom_call.1} parent=1 // loop_header_branch
      %16 = sbr.rel (%p14) target = $region8
    $region5: #{tpu_custom_call.1} parent=1 // loop_body
      %s18 = ssub.s32 %s13, 1
      %s19 = ssub.s32 %s13, 2
      %s20 = sadd.s32 %s13, 1
      %s21 = ssub.s32 %s13, %s20
      %p22 = scmp.eq.s32.totalorder %s21, 0
      %s24 = sadd.s32 %s23, 1
      %s25 = scalar_select %p22, %s23, %s24
      %p28 = pneg %p22
      %p29 = scmp.eq.s32.totalorder %s13, 1
      %p30 = por %p28, %p29
      %p31 = scmp.ne.s32.totalorder %s23, %s26
      %p32 = scmp.eq.s32.totalorder %s13, 0
      %p33 = por %p31, %p32
      %p34 = scmp.ne.s32.totalorder %s23, %s26
      %p35 = scmp.eq.s32.totalorder %s18, 1
      %p36 = por %p34, %p35
      %p37 = scmp.ne.s32.totalorder %s26, %s27
      %p38 = scmp.eq.s32.totalorder %s18, 0
      %p39 = por %p37, %p38
      %p40 = scmp.ne.s32.totalorder %s26, %s27
      %p41 = scmp.eq.s32.totalorder %s19, 1
      %p42 = por %p40, %p41
      %p44 = scmp.ne.s32.totalorder %s27, %s43
      %p45 = scmp.eq.s32.totalorder %s19, 0
      %p46 = por %p44, %p45
      %s48 = sadd.s32 %s47, 1
      %p51 = scmp.eq.s32.totalorder %s13, 1
      %p52 = scmp.ne.s32.totalorder %s47, %s49
      %p53 = scmp.eq.s32.totalorder %s13, 0
      %p54 = por %p52, %p53
      %p55 = scmp.ne.s32.totalorder %s47, %s49
      %p56 = scmp.eq.s32.totalorder %s18, 1
      %p57 = por %p55, %p56
      %p58 = scmp.ne.s32.totalorder %s49, %s50
      %p59 = scmp.eq.s32.totalorder %s18, 0
      %p60 = por %p58, %p59
      %p61 = scmp.ne.s32.totalorder %s49, %s50
      %p62 = scmp.eq.s32.totalorder %s19, 1
      %p63 = por %p61, %p62
      %p65 = scmp.ne.s32.totalorder %s50, %s64
      %p66 = scmp.eq.s32.totalorder %s19, 0
      %p67 = por %p65, %p66
      %s69 = sadd.s32 %s68, 1
      %p72 = scmp.eq.s32.totalorder %s13, 1
      %p73 = scmp.ne.s32.totalorder %s68, %s70
      %p74 = scmp.eq.s32.totalorder %s13, 0
      %p75 = por %p73, %p74
      %p76 = scmp.ne.s32.totalorder %s68, %s70
      %p77 = scmp.eq.s32.totalorder %s18, 1
      %p78 = por %p76, %p77
      %p79 = scmp.ne.s32.totalorder %s70, %s71
      %p80 = scmp.eq.s32.totalorder %s18, 0
      %p81 = por %p79, %p80
      %p82 = scmp.ne.s32.totalorder %s70, %s71
      %p83 = scmp.eq.s32.totalorder %s19, 1
      %p84 = por %p82, %p83
      %p86 = scmp.ne.s32.totalorder %s71, %s85
      %p87 = scmp.eq.s32.totalorder %s19, 0
      %p88 = por %p86, %p87
      %s89 = ssub.s32 %s13, %s20
      %p90 = scmp.eq.s32.totalorder %s89, 0
      %s92 = sadd.s32 %s91, 1
      %s93 = scalar_select %p90, %s91, %s92
      %p96 = pneg %p90
      %p97 = scmp.eq.s32.totalorder %s13, 1
      %p98 = por %p96, %p97
      %p99 = scmp.ne.s32.totalorder %s91, %s94
      %p100 = scmp.eq.s32.totalorder %s13, 0
      %p101 = por %p99, %p100
      %p102 = scmp.ne.s32.totalorder %s91, %s94
      %p103 = scmp.eq.s32.totalorder %s18, 1
      %p104 = por %p102, %p103
      %p105 = scmp.ne.s32.totalorder %s94, %s95
      %p106 = scmp.eq.s32.totalorder %s18, 0
      %p107 = por %p105, %p106
      %p108 = scmp.ne.s32.totalorder %s94, %s95
      %p109 = scmp.eq.s32.totalorder %s19, 1
      %p110 = por %p108, %p109
      %p112 = scmp.ne.s32.totalorder %s95, %s111
      %p113 = scmp.eq.s32.totalorder %s19, 0
      %p114 = por %p112, %p113
      %p115 = scmp.le.s32.totalorder 1, %s13
      %p116 = scmp.lt.s32.totalorder %s13, 3
      %p117 = pnand %p115, %p116
      %p118 = pneg %p117
      // Predicated region
      $region9: #{tpu_custom_call.1} parent=5 // pred_check
        _
      $region10: #{tpu_custom_call.1} parent=5 // pred_check_branch
        %120 = sbr.rel (%p117) target = $region12
      $region11: #{tpu_custom_call.1} parent=5 // pred_region
        %s121 = ssub.s32 %s13, 1
        // Predicated region
        $region13: #{tpu_custom_call.1} parent=11 // pred_check
          %p122 = pneg %p60
        $region14: #{tpu_custom_call.1} parent=11 // pred_check_branch
          %124 = sbr.rel (%p122) target = $region16
        $region15: #{tpu_custom_call.1} parent=11 // pred_region
          %s126 = ssub.s32 128, 128
          %127 = vsyncadd [#allocation5], %s126
          %s129 = sshll.u32 [#allocation4], 4
          %s130 = int_to_ptr.vmem [resolvable:$true] %s129
          %132 = dma.hbm_to_vmem [thread:$0]  %s1, 128, %s130, [#allocation5]
        $region16: #{tpu_custom_call.1} parent=11 // pred_fallthru
          _
        // Predicated region
        $region17: #{tpu_custom_call.1} parent=11 // pred_check
          %p133 = pneg %p81
        $region18: #{tpu_custom_call.1} parent=11 // pred_check_branch
          %135 = sbr.rel (%p133) target = $region20
        $region19: #{tpu_custom_call.1} parent=11 // pred_region
          _
        $region20: #{tpu_custom_call.1} parent=11 // pred_fallthru
          _
      $region12: #{tpu_custom_call.1} parent=5 // pred_fallthru
        _
      %p136 = scmp.lt.s32.totalorder %s13, 2
      // Predicated region
      $region21: #{tpu_custom_call.1} parent=5 // pred_check
        %p137 = pneg %p136
      $region22: #{tpu_custom_call.1} parent=5 // pred_check_branch
        %139 = sbr.rel (%p137) target = $region24
      $region23: #{tpu_custom_call.1} parent=5 // pred_region
        // Predicated region
        $region25: #{tpu_custom_call.1} parent=23 // pred_check
          %p140 = pneg %p33
        $region26: #{tpu_custom_call.1} parent=23 // pred_check_branch
          %142 = sbr.rel (%p140) target = $region28
        $region27: #{tpu_custom_call.1} parent=23 // pred_region
          %s143 = sand.u32 %s23, 1
          %s144 = scalar_lea.sflag [#allocation3], %s143
          %s145 = sand.u32 %s23, 1
          %s146 = smul.addr %s145, 256
          %s147 = scalar_lea.vmem [#allocation2], %s146
          %s148 = smul.u32 16, %s13
          %s150 = ssub.s32 4096, 4096
          %151 = vsyncadd %s144, %s150
          %s152 = smul.addr %s148, 4
          %s153 = smul.addr %s152, 64
          %s154 = scalar_lea.hbm %s0, %s153
          %s155 = sshll.u32 %s147, 4
          %s156 = int_to_ptr.vmem [resolvable:$true] %s155
          %161 = dma.hbm_to_vmem [thread:$0]  %s154, 4096, %s156, %s144, 256, 256, 16
        $region28: #{tpu_custom_call.1} parent=23 // pred_fallthru
          _
      $region24: #{tpu_custom_call.1} parent=5 // pred_fallthru
        _
      %p162 = scmp.le.s32.totalorder 1, %s13
      %p163 = scmp.lt.s32.totalorder %s13, 3
      %p164 = pnand %p162, %p163
      %p165 = pneg %p164
      // Predicated region
      $region29: #{tpu_custom_call.1} parent=5 // pred_check
        _
      $region30: #{tpu_custom_call.1} parent=5 // pred_check_branch
        %167 = sbr.rel (%p164) target = $region32
      $region31: #{tpu_custom_call.1} parent=5 // pred_region
        %s168 = ssub.s32 %s13, 1
        %s169 = sand.u32 %s26, 1
        %s170 = scalar_lea.sflag [#allocation3], %s169
        %s171 = sand.u32 %s26, 1
        %s172 = smul.addr %s171, 256
        %s173 = scalar_lea.vmem [#allocation2], %s172
        // Predicated region
        $region33: #{tpu_custom_call.1} parent=31 // pred_check
          %p174 = pneg %p39
        $region34: #{tpu_custom_call.1} parent=31 // pred_check_branch
          %176 = sbr.rel (%p174) target = $region36
        $region35: #{tpu_custom_call.1} parent=31 // pred_region
          %177 = dma.done %s170, 4096
        $region36: #{tpu_custom_call.1} parent=31 // pred_fallthru
          _
        // Predicated region
        $region37: #{tpu_custom_call.1} parent=31 // pred_check
          %p178 = pneg %p60
        $region38: #{tpu_custom_call.1} parent=31 // pred_check_branch
          %180 = sbr.rel (%p178) target = $region40
        $region39: #{tpu_custom_call.1} parent=31 // pred_region
          %181 = dma.done [#allocation5], 128
        $region40: #{tpu_custom_call.1} parent=31 // pred_fallthru
          _
        %s182 = sand.u32 %s26, 1
        %s183 = scalar_lea.sflag [#allocation3], %s182
        %s184 = sand.u32 %s26, 1
        %s185 = smul.addr %s184, 256
        %s186 = scalar_lea.vmem [#allocation2], %s185
        %p187 = pneg %p39
        %p188 = pneg %p36
        %p189 = pneg %p60
        %p190 = pneg %p57
        %p191 = pneg %p81
        %p192 = pneg %p78
        %p193 = pneg %p107
        %p194 = pneg %p104
        %s195 = smul.u32 16, %s18
        %p196 = scmp.lt.s32.totalorder %s195, 31
        %s197 = scalar_select %p196, %s195, 31
        %s198 = smul.addr %s197, 8
        %s199 = scalar_lea.vmem %s3, %s198
        %s200 = smul.u32 16, %s18
        %s201 = smul.u32 16, %s18
        %p202 = scmp.lt.s32.totalorder %s201, 31
        %s203 = scalar_select %p202, %s201, 31
        %s204 = smul.addr %s203, 8
        %s205 = scalar_lea.vmem %s3, %s204
        %s206 = smul.u32 16, %s18
        %v208 = vld [vmem:[%s173] sm:$0xff]
        %v209 = vld [vmem:[%s173 + $0x8] sm:$0xff]
        %v210 = vld [vmem:[%s173 + $0x10] sm:$0xff]
        %v211 = vld [vmem:[%s173 + $0x18] sm:$0xff]
        %v212 = vld [vmem:[%s173 + $0x20] sm:$0xff]
        %v213 = vld [vmem:[%s173 + $0x28] sm:$0xff]
        %v214 = vld [vmem:[%s173 + $0x30] sm:$0xff]
        %v215 = vld [vmem:[%s173 + $0x38] sm:$0xff]
        %v216 = vld [vmem:[%s173 + $0x40] sm:$0xff]
        %v217 = vld [vmem:[%s173 + $0x48] sm:$0xff]
        %v218 = vld [vmem:[%s173 + $0x50] sm:$0xff]
        %v219 = vld [vmem:[%s173 + $0x58] sm:$0xff]
        %v220 = vld [vmem:[%s173 + $0x60] sm:$0xff]
        %v221 = vld [vmem:[%s173 + $0x68] sm:$0xff]
        %v222 = vld [vmem:[%s173 + $0x70] sm:$0xff]
        %v223 = vld [vmem:[%s173 + $0x78] sm:$0xff]
        %v224 = vld [vmem:[%s173 + $0x80] sm:$0xff]
        %v225 = vld [vmem:[%s173 + $0x88] sm:$0xff]
        %v226 = vld [vmem:[%s173 + $0x90] sm:$0xff]
        %v227 = vld [vmem:[%s173 + $0x98] sm:$0xff]
        %v228 = vld [vmem:[%s173 + $0xa0] sm:$0xff]
        %v229 = vld [vmem:[%s173 + $0xa8] sm:$0xff]
        %v230 = vld [vmem:[%s173 + $0xb0] sm:$0xff]
        %v231 = vld [vmem:[%s173 + $0xb8] sm:$0xff]
        %v232 = vld [vmem:[%s173 + $0xc0] sm:$0xff]
        %v233 = vld [vmem:[%s173 + $0xc8] sm:$0xff]
        %v234 = vld [vmem:[%s173 + $0xd0] sm:$0xff]
        %v235 = vld [vmem:[%s173 + $0xd8] sm:$0xff]
        %v236 = vld [vmem:[%s173 + $0xe0] sm:$0xff]
        %v237 = vld [vmem:[%s173 + $0xe8] sm:$0xff]
        %v238 = vld [vmem:[%s173 + $0xf0] sm:$0xff]
        %v239 = vld [vmem:[%s173 + $0xf8] sm:$0xff]
        %v240 = vld [vmem:[#allocation4] sm:$0xff]
        %v241 = vld [vmem:[%s2] sm:$0x1]
        %v243 = vlaneseq
        %v244 = vshrl.u32 %v243, 7
        %v245 = vsub.s32 0, %v244
        %v246 = vrot.slane %v241, %v245
        %v280 = vunpack.c.l.b16 %v208
        %v281 = vunpack.c.h.b16 %v208
        %v282 = vunpack.c.l.b16 %v209
        %v283 = vunpack.c.h.b16 %v209
        %v284 = vunpack.c.l.b16 %v210
        %v285 = vunpack.c.h.b16 %v210
        %v286 = vunpack.c.l.b16 %v211
        %v287 = vunpack.c.h.b16 %v211
        %v288 = vunpack.c.l.b16 %v212
        %v289 = vunpack.c.h.b16 %v212
        %v290 = vunpack.c.l.b16 %v213
        %v291 = vunpack.c.h.b16 %v213
        %v292 = vunpack.c.l.b16 %v214
        %v293 = vunpack.c.h.b16 %v214
        %v294 = vunpack.c.l.b16 %v215
        %v295 = vunpack.c.h.b16 %v215
        %v296 = vunpack.c.l.b16 %v216
        %v297 = vunpack.c.h.b16 %v216
        %v298 = vunpack.c.l.b16 %v217
        %v299 = vunpack.c.h.b16 %v217
        %v300 = vunpack.c.l.b16 %v218
        %v301 = vunpack.c.h.b16 %v218
        %v302 = vunpack.c.l.b16 %v219
        %v303 = vunpack.c.h.b16 %v219
        %v304 = vunpack.c.l.b16 %v220
        %v305 = vunpack.c.h.b16 %v220
        %v306 = vunpack.c.l.b16 %v221
        %v307 = vunpack.c.h.b16 %v221
        %v308 = vunpack.c.l.b16 %v222
        %v309 = vunpack.c.h.b16 %v222
        %v310 = vunpack.c.l.b16 %v223
        %v311 = vunpack.c.h.b16 %v223
        %v312 = vunpack.c.l.b16 %v224
        %v313 = vunpack.c.h.b16 %v224
        %v314 = vunpack.c.l.b16 %v225
        %v315 = vunpack.c.h.b16 %v225
        %v316 = vunpack.c.l.b16 %v226
        %v317 = vunpack.c.h.b16 %v226
        %v318 = vunpack.c.l.b16 %v227
        %v319 = vunpack.c.h.b16 %v227
        %v320 = vunpack.c.l.b16 %v228
        %v321 = vunpack.c.h.b16 %v228
        %v322 = vunpack.c.l.b16 %v229
        %v323 = vunpack.c.h.b16 %v229
        %v324 = vunpack.c.l.b16 %v230
        %v325 = vunpack.c.h.b16 %v230
        %v326 = vunpack.c.l.b16 %v231
        %v327 = vunpack.c.h.b16 %v231
        %v328 = vunpack.c.l.b16 %v232
        %v329 = vunpack.c.h.b16 %v232
        %v330 = vunpack.c.l.b16 %v233
        %v331 = vunpack.c.h.b16 %v233
        %v332 = vunpack.c.l.b16 %v234
        %v333 = vunpack.c.h.b16 %v234
        %v334 = vunpack.c.l.b16 %v235
        %v335 = vunpack.c.h.b16 %v235
        %v336 = vunpack.c.l.b16 %v236
        %v337 = vunpack.c.h.b16 %v236
        %v338 = vunpack.c.l.b16 %v237
        %v339 = vunpack.c.h.b16 %v237
        %v340 = vunpack.c.l.b16 %v238
        %v341 = vunpack.c.h.b16 %v238
        %v342 = vunpack.c.l.b16 %v239
        %v343 = vunpack.c.h.b16 %v239
        %v344 = vpack.c.b16 %v284, %v280
        %v345 = vpack.c.b16 %v285, %v281
        %v346 = vpack.c.b16 %v286, %v282
        %v347 = vpack.c.b16 %v287, %v283
        %v348 = vpack.c.b16 %v292, %v288
        %v349 = vpack.c.b16 %v293, %v289
        %v350 = vpack.c.b16 %v294, %v290
        %v351 = vpack.c.b16 %v295, %v291
        %v352 = vpack.c.b16 %v300, %v296
        %v353 = vpack.c.b16 %v301, %v297
        %v354 = vpack.c.b16 %v302, %v298
        %v355 = vpack.c.b16 %v303, %v299
        %v356 = vpack.c.b16 %v308, %v304
        %v357 = vpack.c.b16 %v309, %v305
        %v358 = vpack.c.b16 %v310, %v306
        %v359 = vpack.c.b16 %v311, %v307
        %v360 = vpack.c.b16 %v316, %v312
        %v361 = vpack.c.b16 %v317, %v313
        %v362 = vpack.c.b16 %v318, %v314
        %v363 = vpack.c.b16 %v319, %v315
        %v364 = vpack.c.b16 %v324, %v320
        %v365 = vpack.c.b16 %v325, %v321
        %v366 = vpack.c.b16 %v326, %v322
        %v367 = vpack.c.b16 %v327, %v323
        %v368 = vpack.c.b16 %v332, %v328
        %v369 = vpack.c.b16 %v333, %v329
        %v370 = vpack.c.b16 %v334, %v330
        %v371 = vpack.c.b16 %v335, %v331
        %v372 = vpack.c.b16 %v340, %v336
        %v373 = vpack.c.b16 %v341, %v337
        %v374 = vpack.c.b16 %v342, %v338
        %v375 = vpack.c.b16 %v343, %v339
        %v409 = vcombine.high %v240, %v240
        %v411 = vunpack.c.l.s4 1983009808
        %v412 = vunpack.c.0.s8 %v411
        %v413 = vlaneseq
        %v414 = vshrl.u32 %v413, 7
        %v415 = vsub.s32 %v412, %v414
        %v416 = vrot.slane %v240, %v415
        %v418 = vunpack.c.l.s4 1983009808
        %v419 = vunpack.c.0.s8 %v418
        %v420 = vlaneseq
        %v421 = vshrl.u32 %v420, 7
        %v422 = vsub.s32 %v419, %v421
        %v423 = vrot.slane %v409, %v422
        %v424 = vcombine.high %v416, %v416
        %v425 = vcombine.high %v423, %v423
        %430 = vmatprep.subr.bf16.mxu0 0
        %431 = vmatpush1.bf16.xpose.msra.mxu0 0
        %432 = vmatprep.subr.bf16.mxu0 0
        %433 = vmatpush1.bf16.xpose.msra.mxu0 0
        %434 = vmatprep.subr.bf16.mxu0 0
        %435 = vmatpush1.bf16.xpose.msra.mxu0 0
        %436 = vmatprep.subr.bf16.mxu0 0
        %437 = vmatpush1.bf16.xpose.msra.mxu0 0
        %438 = vmatprep.subr.bf16.mxu0 0
        %439 = vmatpush1.bf16.xpose.msra.mxu0 0
        %440 = vmatprep.subr.bf16.mxu0 0
        %441 = vmatpush1.bf16.xpose.msra.mxu0 0
        %442 = vmatprep.subr.bf16.mxu0 0
        %443 = vmatpush1.bf16.xpose.msra.mxu0 0
        %444 = vmatprep.subr.bf16.mxu0 %v424
        %445 = vmatpush1.bf16.xpose.msra.mxu0 %v416
        %446 = vmatprep.subr.bf16.mxu0 0
        %447 = vmatpush2.bf16.xpose.msra.mxu0 0
        %448 = vmatprep.subr.bf16.mxu0 0
        %449 = vmatpush2.bf16.xpose.msra.mxu0 0
        %450 = vmatprep.subr.bf16.mxu0 0
        %451 = vmatpush2.bf16.xpose.msra.mxu0 0
        %452 = vmatprep.subr.bf16.mxu0 0
        %453 = vmatpush2.bf16.xpose.msra.mxu0 0
        %454 = vmatprep.subr.bf16.mxu0 0
        %455 = vmatpush2.bf16.xpose.msra.mxu0 0
        %456 = vmatprep.subr.bf16.mxu0 0
        %457 = vmatpush2.bf16.xpose.msra.mxu0 0
        %458 = vmatprep.subr.bf16.mxu0 0
        %459 = vmatpush2.bf16.xpose.msra.mxu0 0
        %460 = vmatprep.subr.bf16.mxu0 0
        %461 = vmatpush2.bf16.xpose.msra.mxu0 0
        %462 = vmatprep.mubr.bf16.mxu0 %v345
        %463 = vmatmul.mubr.bf16.gmra.mxu0 %v344
        %v464 = vpop.f32.mrf.mxu0
        %v465 = vadd.f32 %v246, %v464
        %v466 = vpop.f32.mrf.mxu0
        %v467 = vpop.f32.mrf.mxu0
        %v468 = vadd.f32 %v246, %v467
        %v469 = vpop.f32.mrf.mxu0
        %470 = vmatprep.mubr.bf16.mxu0 %v349
        %471 = vmatmul.mubr.bf16.gmra.mxu0 %v348
        %v472 = vpop.f32.mrf.mxu0
        %v473 = vadd.f32 %v246, %v472
        %v474 = vpop.f32.mrf.mxu0
        %v475 = vpop.f32.mrf.mxu0
        %v476 = vadd.f32 %v246, %v475
        %v477 = vpop.f32.mrf.mxu0
        %478 = vmatprep.mubr.bf16.mxu0 %v353
        %479 = vmatmul.mubr.bf16.gmra.mxu0 %v352
        %v480 = vpop.f32.mrf.mxu0
        %v481 = vadd.f32 %v246, %v480
        %v482 = vpop.f32.mrf.mxu0
        %v483 = vpop.f32.mrf.mxu0
        %v484 = vadd.f32 %v246, %v483
        %v485 = vpop.f32.mrf.mxu0
        %486 = vmatprep.mubr.bf16.mxu0 %v357
        %487 = vmatmul.mubr.bf16.gmra.mxu0 %v356
        %v488 = vpop.f32.mrf.mxu0
        %v489 = vadd.f32 %v246, %v488
        %v490 = vpop.f32.mrf.mxu0
        %v491 = vpop.f32.mrf.mxu0
        %v492 = vadd.f32 %v246, %v491
        %v493 = vpop.f32.mrf.mxu0
        %494 = vmatprep.mubr.bf16.mxu0 %v361
        %495 = vmatmul.mubr.bf16.gmra.mxu0 %v360
        %v496 = vpop.f32.mrf.mxu0
        %v497 = vadd.f32 %v246, %v496
        %v498 = vpop.f32.mrf.mxu0
        %v499 = vpop.f32.mrf.mxu0
        %v500 = vadd.f32 %v246, %v499
        %v501 = vpop.f32.mrf.mxu0
        %502 = vmatprep.mubr.bf16.mxu0 %v365
        %503 = vmatmul.mubr.bf16.gmra.mxu0 %v364
        %v504 = vpop.f32.mrf.mxu0
        %v505 = vadd.f32 %v246, %v504
        %v506 = vpop.f32.mrf.mxu0
        %v507 = vpop.f32.mrf.mxu0
        %v508 = vadd.f32 %v246, %v507
        %v509 = vpop.f32.mrf.mxu0
        %510 = vmatprep.mubr.bf16.mxu0 %v369
        %511 = vmatmul.mubr.bf16.gmra.mxu0 %v368
        %v512 = vpop.f32.mrf.mxu0
        %v513 = vadd.f32 %v246, %v512
        %v514 = vpop.f32.mrf.mxu0
        %v515 = vpop.f32.mrf.mxu0
        %v516 = vadd.f32 %v246, %v515
        %v517 = vpop.f32.mrf.mxu0
        %518 = vmatprep.mubr.bf16.mxu0 %v373
        %519 = vmatmul.mubr.bf16.gmra.mxu0 %v372
        %v520 = vpop.f32.mrf.mxu0
        %v521 = vadd.f32 %v246, %v520
        %v522 = vpop.f32.mrf.mxu0
        %v523 = vpop.f32.mrf.mxu0
        %v524 = vadd.f32 %v246, %v523
        %v525 = vpop.f32.mrf.mxu0
        %526 = vdwg.mxu0
        %527 = vmatprep.subr.bf16.mxu0 0
        %528 = vmatpush1.bf16.xpose.msra.mxu0 0
        %529 = vmatprep.subr.bf16.mxu0 0
        %530 = vmatpush1.bf16.xpose.msra.mxu0 0
        %531 = vmatprep.subr.bf16.mxu0 0
        %532 = vmatpush1.bf16.xpose.msra.mxu0 0
        %533 = vmatprep.subr.bf16.mxu0 0
        %534 = vmatpush1.bf16.xpose.msra.mxu0 0
        %535 = vmatprep.subr.bf16.mxu0 0
        %536 = vmatpush1.bf16.xpose.msra.mxu0 0
        %537 = vmatprep.subr.bf16.mxu0 0
        %538 = vmatpush1.bf16.xpose.msra.mxu0 0
        %539 = vmatprep.subr.bf16.mxu0 0
        %540 = vmatpush1.bf16.xpose.msra.mxu0 0
        %541 = vmatprep.subr.bf16.mxu0 %v425
        %542 = vmatpush1.bf16.xpose.msra.mxu0 %v423
        %543 = vmatprep.subr.bf16.mxu0 0
        %544 = vmatpush2.bf16.xpose.msra.mxu0 0
        %545 = vmatprep.subr.bf16.mxu0 0
        %546 = vmatpush2.bf16.xpose.msra.mxu0 0
        %547 = vmatprep.subr.bf16.mxu0 0
        %548 = vmatpush2.bf16.xpose.msra.mxu0 0
        %549 = vmatprep.subr.bf16.mxu0 0
        %550 = vmatpush2.bf16.xpose.msra.mxu0 0
        %551 = vmatprep.subr.bf16.mxu0 0
        %552 = vmatpush2.bf16.xpose.msra.mxu0 0
        %553 = vmatprep.subr.bf16.mxu0 0
        %554 = vmatpush2.bf16.xpose.msra.mxu0 0
        %555 = vmatprep.subr.bf16.mxu0 0
        %556 = vmatpush2.bf16.xpose.msra.mxu0 0
        %557 = vmatprep.subr.bf16.mxu0 0
        %558 = vmatpush2.bf16.xpose.msra.mxu0 0
        %559 = vmatprep.mubr.bf16.mxu0 %v347
        %560 = vmatmul.mubr.bf16.gmra.mxu0 %v346
        %v561 = vpop.f32.mrf.mxu0
        %v562 = vadd.f32 %v465, %v561
        %v563 = vpop.f32.mrf.mxu0
        %v564 = vpop.f32.mrf.mxu0
        %v565 = vadd.f32 %v468, %v564
        %v566 = vpop.f32.mrf.mxu0
        %567 = vmatprep.mubr.bf16.mxu0 %v351
        %568 = vmatmul.mubr.bf16.gmra.mxu0 %v350
        %v569 = vpop.f32.mrf.mxu0
        %v570 = vadd.f32 %v473, %v569
        %v571 = vpop.f32.mrf.mxu0
        %v572 = vpop.f32.mrf.mxu0
        %v573 = vadd.f32 %v476, %v572
        %v574 = vpop.f32.mrf.mxu0
        %575 = vmatprep.mubr.bf16.mxu0 %v355
        %576 = vmatmul.mubr.bf16.gmra.mxu0 %v354
        %v577 = vpop.f32.mrf.mxu0
        %v578 = vadd.f32 %v481, %v577
        %v579 = vpop.f32.mrf.mxu0
        %v580 = vpop.f32.mrf.mxu0
        %v581 = vadd.f32 %v484, %v580
        %v582 = vpop.f32.mrf.mxu0
        %583 = vmatprep.mubr.bf16.mxu0 %v359
        %584 = vmatmul.mubr.bf16.gmra.mxu0 %v358
        %v585 = vpop.f32.mrf.mxu0
        %v586 = vadd.f32 %v489, %v585
        %v587 = vpop.f32.mrf.mxu0
        %v588 = vpop.f32.mrf.mxu0
        %v589 = vadd.f32 %v492, %v588
        %v590 = vpop.f32.mrf.mxu0
        %591 = vmatprep.mubr.bf16.mxu0 %v363
        %592 = vmatmul.mubr.bf16.gmra.mxu0 %v362
        %v593 = vpop.f32.mrf.mxu0
        %v594 = vadd.f32 %v497, %v593
        %v595 = vpop.f32.mrf.mxu0
        %v596 = vpop.f32.mrf.mxu0
        %v597 = vadd.f32 %v500, %v596
        %v598 = vpop.f32.mrf.mxu0
        %599 = vmatprep.mubr.bf16.mxu0 %v367
        %600 = vmatmul.mubr.bf16.gmra.mxu0 %v366
        %v601 = vpop.f32.mrf.mxu0
        %v602 = vadd.f32 %v505, %v601
        %v603 = vpop.f32.mrf.mxu0
        %v604 = vpop.f32.mrf.mxu0
        %v605 = vadd.f32 %v508, %v604
        %v606 = vpop.f32.mrf.mxu0
        %607 = vmatprep.mubr.bf16.mxu0 %v371
        %608 = vmatmul.mubr.bf16.gmra.mxu0 %v370
        %v609 = vpop.f32.mrf.mxu0
        %v610 = vadd.f32 %v513, %v609
        %v611 = vpop.f32.mrf.mxu0
        %v612 = vpop.f32.mrf.mxu0
        %v613 = vadd.f32 %v516, %v612
        %v614 = vpop.f32.mrf.mxu0
        %615 = vmatprep.mubr.bf16.mxu0 %v375
        %616 = vmatmul.mubr.bf16.gmra.mxu0 %v374
        %v617 = vpop.f32.mrf.mxu0
        %v618 = vadd.f32 %v521, %v617
        %v619 = vpop.f32.mrf.mxu0
        %v620 = vpop.f32.mrf.mxu0
        %v621 = vadd.f32 %v524, %v620
        %v622 = vpop.f32.mrf.mxu0
        %623 = vdwg.mxu0
        %v624 = vtanh.pop %v562
        %v625 = vtanh.pop %v565
        %v626 = vtanh.pop %v570
        %v627 = vtanh.pop %v573
        %v628 = vtanh.pop %v578
        %v629 = vtanh.pop %v581
        %v630 = vtanh.pop %v586
        %v631 = vtanh.pop %v589
        %v632 = vtanh.pop %v594
        %v633 = vtanh.pop %v597
        %v634 = vtanh.pop %v602
        %v635 = vtanh.pop %v605
        %v636 = vtanh.pop %v610
        %v637 = vtanh.pop %v613
        %v638 = vtanh.pop %v618
        %v639 = vtanh.pop %v621
        %vm640 = vcmask 31744
        %641 = vst.msk [vmem:[%s205] sm:$0xff] %vm640, %v624
        %642 = vst.msk [vmem:[%s205 + $0x8] sm:$0xff] %vm640, %v625
        %643 = vst.msk [vmem:[%s205 + $0x10] sm:$0xff] %vm640, %v626
        %644 = vst.msk [vmem:[%s205 + $0x18] sm:$0xff] %vm640, %v627
        %645 = vst.msk [vmem:[%s205 + $0x20] sm:$0xff] %vm640, %v628
        %646 = vst.msk [vmem:[%s205 + $0x28] sm:$0xff] %vm640, %v629
        %647 = vst.msk [vmem:[%s205 + $0x30] sm:$0xff] %vm640, %v630
        %648 = vst.msk [vmem:[%s205 + $0x38] sm:$0xff] %vm640, %v631
        %649 = vst.msk [vmem:[%s205 + $0x40] sm:$0xff] %vm640, %v632
        %650 = vst.msk [vmem:[%s205 + $0x48] sm:$0xff] %vm640, %v633
        %651 = vst.msk [vmem:[%s205 + $0x50] sm:$0xff] %vm640, %v634
        %652 = vst.msk [vmem:[%s205 + $0x58] sm:$0xff] %vm640, %v635
        %653 = vst.msk [vmem:[%s205 + $0x60] sm:$0xff] %vm640, %v636
        %654 = vst.msk [vmem:[%s205 + $0x68] sm:$0xff] %vm640, %v637
        %655 = vst.msk [vmem:[%s205 + $0x70] sm:$0xff] %vm640, %v638
        %656 = vst.msk [vmem:[%s205 + $0x78] sm:$0xff] %vm640, %v639
        %s657 = smul.u32 16, %s18
        %p658 = scmp.lt.s32.totalorder %s657, 31
        %s659 = scalar_select %p658, %s657, 31
        %s660 = smul.addr %s659, 8
        %s661 = scalar_lea.vmem %s3, %s660
        // Predicated region
        $region41: #{tpu_custom_call.1} parent=31 // pred_check
          %p662 = pneg %p104
        $region42: #{tpu_custom_call.1} parent=31 // pred_check_branch
          %664 = sbr.rel (%p662) target = $region44
        $region43: #{tpu_custom_call.1} parent=31 // pred_region
          %s665 = smul.u32 16, %s18
        $region44: #{tpu_custom_call.1} parent=31 // pred_fallthru
          _
      $region32: #{tpu_custom_call.1} parent=5 // pred_fallthru
        _
      %p666 = scmp.le.s32.totalorder 2, %s13
      // Predicated region
      $region45: #{tpu_custom_call.1} parent=5 // pred_check
        %p667 = pneg %p666
      $region46: #{tpu_custom_call.1} parent=5 // pred_check_branch
        %669 = sbr.rel (%p667) target = $region48
      $region47: #{tpu_custom_call.1} parent=5 // pred_region
        %s670 = ssub.s32 %s13, 2
        // Predicated region
        $region49: #{tpu_custom_call.1} parent=47 // pred_check
          %p671 = pneg %p110
        $region50: #{tpu_custom_call.1} parent=47 // pred_check_branch
          %673 = sbr.rel (%p671) target = $region52
        $region51: #{tpu_custom_call.1} parent=47 // pred_region
          %s674 = smul.u32 16, %s19
          %p675 = scmp.lt.s32.totalorder %s674, 31
          %s676 = scalar_select %p675, %s674, 31
          %s677 = smul.addr %s676, 8
          %s678 = scalar_lea.vmem %s3, %s677
        $region52: #{tpu_custom_call.1} parent=47 // pred_fallthru
          _
      $region48: #{tpu_custom_call.1} parent=5 // pred_fallthru
        _
    $region6: #{tpu_custom_call.1} parent=1 // loop_footer
      %s17 = sadd.s32 1, %s13
    $region7: #{tpu_custom_call.1} parent=1 // loop_footer_branch
      %12 = sbr.rel target = $region3
    $region8: #{tpu_custom_call.1} parent=1 // loop_exit
      _
    %679 = vsyncpa [#allocation3], 1
    %s680 = scalar_lea.sflag [#allocation3], 1
    %681 = vsyncpa %s680, 1
    %682 = vsyncpa [#allocation5], 1

</llo_original>
